<compile_context>
chip_gen: v6e
topology: v6e:2x2x1
jax: 0.10.0
libtpu: 0.0.40
codegen_flags: <defaults>
</compile_context>

<pallas_src>
import functools

import jax
import jax.numpy as jnp
from jax.experimental import pallas as pl
from jax.experimental.pallas import tpu as pltpu


def _round_up(n, m):
    return ((n + m - 1) // m) * m


def flow_sigma_kernel(x_ref, w0_ref, b0_ref, wh_ref, bh_ref, wo_ref, bo_ref,
                      out_ref, *, num_layers):
    # x_ref block is (TB, D) straight from HBM in natural row-major layout.
    # Flip it once to batch-on-lane form in VMEM (XLU relayout, ~free vs. an
    # HBM relayout pass in the wrapper).
    xt = jnp.transpose(x_ref[...])                       # [D, TB] f32
    x_bf16 = xt.astype(jnp.bfloat16)                     # MXU operand

    # First layer: W0 is zero-padded to [H, D] (column 0 multiplies x1 with
    # weight 0), so the whole x tile is the K=D contraction operand.
    h = jnp.dot(w0_ref[...], x_bf16,
                preferred_element_type=jnp.float32) + b0_ref[...]   # [H, TB] f32
    h = jnp.maximum(h, 0.0)                              # ReLU in f32 (v5e-safe VPU)
    if num_layers > 0:
        h = h.astype(jnp.bfloat16)                       # bf16 activations between layers

    for layer in range(num_layers):                      # static unroll
        hf = jnp.dot(wh_ref[layer], h,
                     preferred_element_type=jnp.float32) + bh_ref[layer]   # [H, TB]
        hf = jnp.maximum(hf, 0.0)
        # Cast only when the activation feeds another MXU matmul; the final
        # hidden output stays f32 for the VPU projection below.
        h = hf.astype(jnp.bfloat16) if layer + 1 < num_layers else hf

    # Final [H] -> 1 projection: VPU multiply + sublane (XLU) reduce instead of
    # an N=1 MXU pass.
    g = jnp.sum(h * wo_ref[...], axis=0, keepdims=True) + bo_ref[...]      # [1, TB]

    y1 = jax.nn.sigmoid(xt[0:1, :] + g)                  # [1, TB] f32, lane-dense EUP

    # Assemble the (TB, D) output block in place:
    #   columns 1: = pass-through features (direct VMEM->VMEM copy of the input
    #                block -- required to produce the concatenated result with a
    #                single contiguous writeback DMA and no extra XLA concat pass)
    #   column 0   = y1 (small [1,TB] -> [TB,1] XLU relayout)
    out_ref[:, 1:] = x_ref[:, 1:]
    out_ref[:, 0:1] = jnp.transpose(y1).astype(out_ref.dtype)


@functools.partial(jax.jit, static_argnames=("block_b",))
def flow_sigma_forward(x, w0, b0, wh, bh, wo, bo, *, block_b=8192):
    """Forward pass of flowModel(mode="sigma").

    x:  [B, D] f32 (natural layout; no wrapper relayout of the batch is done).
    w0: [D-1, H], b0: [1, H], wh: [L, H, H], bh: [L, 1, H], wo: [H, 1], bo: [1, 1]
        in x @ W + b layout (PyTorch nn.Linear weights transposed).
    """
    B, D = x.shape
    H = w0.shape[1]
    num_layers = wh.shape[0]

    # --- Weight relayout: O(H^2) work, negligible vs. batch traffic. ---------
    # First-layer weight transposed + zero-padded to [H, D] (column 0 = 0).
    w0_t = jnp.zeros((H, D), jnp.bfloat16).at[:, 1:].set(
        jnp.transpose(w0).astype(jnp.bfloat16))
    b0_t = jnp.transpose(b0)                                    # [H, 1]   f32
    wh_t = jnp.transpose(wh, (0, 2, 1)).astype(jnp.bfloat16)    # [L, H, H] bf16
    bh_t = jnp.transpose(bh, (0, 2, 1))                         # [L, H, 1] f32
    wo_c = wo.reshape(H, 1)                                     # [H, 1]   f32 (VPU reduce)
    bo_c = bo.reshape(1, 1)                                     # [1, 1]   f32

    # --- Batch tile (rows). VMEM math: each (TB, 4) f32 I/O block is padded to
    # 128 lanes -> ~512 B/row/buffer; in+out double-buffered ~= 2 KiB/row, plus
    # a few [H, TB] activation temps. TB=8192 => ~16 MiB I/O + ~4-8 MiB temps,
    # within the 32 MiB scoped default and v7x's 64 MiB physical VMEM. ---------
    TB = max(8, min(_round_up(block_b, 8), _round_up(B, 8)))
    grid_b = pl.cdiv(B, TB)   # >= 2 steps whenever B > TB -> megacore sharding on v7x.

    flops = 2 * B * (H * (D - 1) + num_layers * H * H + H)
    weight_bytes = (w0_t.size + wh_t.size) * 2 + (
        b0_t.size + bh_t.size + wo_c.size + bo_c.size) * 4
    cost = pl.CostEstimate(flops=flops, transcendentals=B,
                           bytes_accessed=2 * B * D * 4 + weight_bytes)

    kernel = functools.partial(flow_sigma_kernel, num_layers=num_layers)
    out = pl.pallas_call(
        kernel,
        out_shape=jax.ShapeDtypeStruct((B, D), x.dtype),
        grid=(grid_b,),
        in_specs=[
            # x in natural [B, D] layout; ragged last tile masked by Pallas.
            pl.BlockSpec((TB, D), lambda i: (i, 0)),
            # Weights/biases: constant index maps -> DMA'd once, resident in
            # VMEM across all grid steps (only a few KiB; the default second
            # pipeline buffer is negligible, so Buffered(1) is not used).
            pl.BlockSpec((H, D), lambda i: (0, 0)),                   # W0^T (zero-padded, bf16)
            pl.BlockSpec((H, 1), lambda i: (0, 0)),                   # b0^T
            pl.BlockSpec((num_layers, H, H), lambda i: (0, 0, 0)),    # Wh^T (bf16)
            pl.BlockSpec((num_layers, H, 1), lambda i: (0, 0, 0)),    # bh^T
            pl.BlockSpec((H, 1), lambda i: (0, 0)),                   # wo column
            pl.BlockSpec((1, 1), lambda i: (0, 0)),                   # bo
        ],
        out_specs=pl.BlockSpec((TB, D), lambda i: (i, 0)),
        compiler_params=pltpu.CompilerParams(
            dimension_semantics=("parallel",),
            vmem_limit_bytes=48 * 1024 * 1024),
        cost_estimate=cost,
    )(x, w0_t, b0_t, wh_t, bh_t, wo_c, bo_c)

    return out


def init_params(key, dim, hidden_dim, num_layers):
    """Deterministic synthetic init matching build_relu(dim-1, hidden_dim, num_layers)."""
    in_dim = dim - 1
    ks = jax.random.split(key, 6)
    scale0 = 1.0 / jnp.sqrt(in_dim)
    scaleh = 1.0 / jnp.sqrt(hidden_dim)
    w0 = jax.random.uniform(ks[0], (in_dim, hidden_dim), jnp.float32, -scale0, scale0)
    b0 = jax.random.uniform(ks[1], (1, hidden_dim), jnp.float32, -scale0, scale0)
    wh = jax.random.uniform(ks[2], (num_layers, hidden_dim, hidden_dim), jnp.float32,
                            -scaleh, scaleh)
    bh = jax.random.uniform(ks[3], (num_layers, 1, hidden_dim), jnp.float32,
                            -scaleh, scaleh)
    wo = jax.random.uniform(ks[4], (hidden_dim, 1), jnp.float32, -scaleh, scaleh)
    bo = jax.random.uniform(ks[5], (1, 1), jnp.float32, -scaleh, scaleh)
    return w0, b0, wh, bh, wo, bo


def flow_sigma_reference(x, w0, b0, wh, bh, wo, bo):
    """Pure-JAX reference mirroring the PyTorch forward (same bf16 matmul casts)."""
    x1, x2 = x[:, :1], x[:, 1:]
    h = jnp.dot(x2.astype(jnp.bfloat16), w0.astype(jnp.bfloat16),
                preferred_element_type=jnp.float32) + b0
    h = jnp.maximum(h, 0.0)
    for layer in range(wh.shape[0]):
        h = jnp.dot(h.astype(jnp.bfloat16), wh[layer].astype(jnp.bfloat16),
                    preferred_element_type=jnp.float32) + bh[layer]
        h = jnp.maximum(h, 0.0)
    g = jnp.sum(h * wo[:, 0], axis=1, keepdims=True) + bo     # f32 VPU-style projection
    y1 = jax.nn.sigmoid(x1 + g)
    return jnp.concatenate([y1, x2], axis=1)


if __name__ == "__main__":
    dim, hidden_dim, num_layers = 4, 32, 2
    batch = 200          # with block_b=128: 2 grid steps + a ragged (masked) last tile

    key = jax.random.PRNGKey(0)
    kx, kp = jax.random.split(key)
    x = jax.random.normal(kx, (batch, dim), dtype=jnp.float32)
    params = init_params(kp, dim, hidden_dim, num_layers)

    out = flow_sigma_forward(x, *params, block_b=128)
    out = jax.block_until_ready(out)

    ref = flow_sigma_reference(x, *params)
    assert out.shape == (batch, dim)
    assert jnp.allclose(out, ref, atol=1e-3, rtol=1e-3), float(jnp.max(jnp.abs(out - ref)))

    print("KERNEL_OK")
</pallas_src>

<mosaic_0001>
module attributes {stable_mosaic.version = 11 : i64} {
  func.func @flow_sigma_kernel(%arg0: i32, %arg1: memref<128x4xf32, #tpu.memory_space<vmem>>, %arg2: memref<32x4xbf16, #tpu.memory_space<vmem>>, %arg3: memref<32x1xf32, #tpu.memory_space<vmem>>, %arg4: memref<2x32x32xbf16, #tpu.memory_space<vmem>>, %arg5: memref<2x32x1xf32, #tpu.memory_space<vmem>>, %arg6: memref<32x1xf32, #tpu.memory_space<vmem>>, %arg7: memref<1x1xf32, #tpu.memory_space<vmem>>, %arg8: memref<128x4xf32, #tpu.memory_space<vmem>>) attributes {dimension_semantics = [#tpu.dimension_semantics<parallel>], iteration_bounds = array<i64: 2>, scalar_prefetch = 0 : i64, scratch_operands = 0 : i64, tpu.core_type = #tpu.core_type<tc>, window_params = [{transform_indices = @transform_0, window_bounds = array<i64: 128, 4>}, {pipeline_mode = #tpu.pipeline_mode<synchronous>, transform_indices = @transform_1, window_bounds = array<i64: 32, 4>}, {pipeline_mode = #tpu.pipeline_mode<synchronous>, transform_indices = @transform_2, window_bounds = array<i64: 32, 1>}, {pipeline_mode = #tpu.pipeline_mode<synchronous>, transform_indices = @transform_3, window_bounds = array<i64: 2, 32, 32>}, {pipeline_mode = #tpu.pipeline_mode<synchronous>, transform_indices = @transform_4, window_bounds = array<i64: 2, 32, 1>}, {pipeline_mode = #tpu.pipeline_mode<synchronous>, transform_indices = @transform_5, window_bounds = array<i64: 32, 1>}, {pipeline_mode = #tpu.pipeline_mode<synchronous>, transform_indices = @transform_6, window_bounds = array<i64: 1, 1>}, {transform_indices = @transform_7, window_bounds = array<i64: 128, 4>}]} {
    %c0 = arith.constant 0 : index
    %c0_0 = arith.constant 0 : index
    %0 = vector.load %arg1[%c0, %c0_0] : memref<128x4xf32, #tpu.memory_space<vmem>>, vector<128x4xf32>
    %1 = tpu.transpose %0, [1, 0] : vector<128x4xf32> -> vector<4x128xf32>
    %2 = arith.truncf %1 : vector<4x128xf32> to vector<4x128xbf16>
    %c0_1 = arith.constant 0 : index
    %c0_2 = arith.constant 0 : index
    %3 = vector.load %arg2[%c0_1, %c0_2] : memref<32x4xbf16, #tpu.memory_space<vmem>>, vector<32x4xbf16>
    %cst = arith.constant dense<0.000000e+00> : vector<32x128xf32>
    %4 = tpu.matmul %3, %2, %cst {dimension_numbers = #tpu.dot_dimension_numbers<[1], [0], [0], [1], [0, 0, 1, 1], [], []>} : vector<32x4xbf16>, vector<4x128xbf16>, vector<32x128xf32> -> vector<32x128xf32>
    %c0_3 = arith.constant 0 : index
    %c0_4 = arith.constant 0 : index
    %5 = vector.load %arg3[%c0_3, %c0_4] : memref<32x1xf32, #tpu.memory_space<vmem>>, vector<32x1xf32>
    %6 = vector.broadcast %5 : vector<32x1xf32> to vector<32x128xf32>
    %7 = arith.addf %4, %6 : vector<32x128xf32>
    %cst_5 = arith.constant 0.000000e+00 : f32
    %8 = vector.broadcast %cst_5 : f32 to vector<32x128xf32>
    %9 = arith.maximumf %7, %8 : vector<32x128xf32>
    %10 = arith.truncf %9 : vector<32x128xf32> to vector<32x128xbf16>
    %c0_6 = arith.constant 0 : index
    %c0_7 = arith.constant 0 : index
    %c0_8 = arith.constant 0 : index
    %11 = vector.load %arg4[%c0_6, %c0_7, %c0_8] : memref<2x32x32xbf16, #tpu.memory_space<vmem>>, vector<1x32x32xbf16>
    %12 = vector.shape_cast %11 : vector<1x32x32xbf16> to vector<32x32xbf16>
    %cst_9 = arith.constant dense<0.000000e+00> : vector<32x128xf32>
    %13 = tpu.matmul %12, %10, %cst_9 {dimension_numbers = #tpu.dot_dimension_numbers<[1], [0], [0], [1], [0, 0, 1, 1], [], []>} : vector<32x32xbf16>, vector<32x128xbf16>, vector<32x128xf32> -> vector<32x128xf32>
    %c0_10 = arith.constant 0 : index
    %c0_11 = arith.constant 0 : index
    %c0_12 = arith.constant 0 : index
    %14 = vector.load %arg5[%c0_10, %c0_11, %c0_12] : memref<2x32x1xf32, #tpu.memory_space<vmem>>, vector<1x32x1xf32>
    %15 = vector.shape_cast %14 : vector<1x32x1xf32> to vector<32x1xf32>
    %16 = vector.broadcast %15 : vector<32x1xf32> to vector<32x128xf32>
    %17 = arith.addf %13, %16 : vector<32x128xf32>
    %cst_13 = arith.constant 0.000000e+00 : f32
    %18 = vector.broadcast %cst_13 : f32 to vector<32x128xf32>
    %19 = arith.maximumf %17, %18 : vector<32x128xf32>
    %20 = arith.truncf %19 : vector<32x128xf32> to vector<32x128xbf16>
    %c1 = arith.constant 1 : index
    %c0_14 = arith.constant 0 : index
    %c0_15 = arith.constant 0 : index
    %21 = vector.load %arg4[%c1, %c0_14, %c0_15] : memref<2x32x32xbf16, #tpu.memory_space<vmem>>, vector<1x32x32xbf16>
    %22 = vector.shape_cast %21 : vector<1x32x32xbf16> to vector<32x32xbf16>
    %cst_16 = arith.constant dense<0.000000e+00> : vector<32x128xf32>
    %23 = tpu.matmul %22, %20, %cst_16 {dimension_numbers = #tpu.dot_dimension_numbers<[1], [0], [0], [1], [0, 0, 1, 1], [], []>} : vector<32x32xbf16>, vector<32x128xbf16>, vector<32x128xf32> -> vector<32x128xf32>
    %c1_17 = arith.constant 1 : index
    %c0_18 = arith.constant 0 : index
    %c0_19 = arith.constant 0 : index
    %24 = vector.load %arg5[%c1_17, %c0_18, %c0_19] : memref<2x32x1xf32, #tpu.memory_space<vmem>>, vector<1x32x1xf32>
    %25 = vector.shape_cast %24 : vector<1x32x1xf32> to vector<32x1xf32>
    %26 = vector.broadcast %25 : vector<32x1xf32> to vector<32x128xf32>
    %27 = arith.addf %23, %26 : vector<32x128xf32>
    %cst_20 = arith.constant 0.000000e+00 : f32
    %28 = vector.broadcast %cst_20 : f32 to vector<32x128xf32>
    %29 = arith.maximumf %27, %28 : vector<32x128xf32>
    %c0_21 = arith.constant 0 : index
    %c0_22 = arith.constant 0 : index
    %30 = vector.load %arg6[%c0_21, %c0_22] : memref<32x1xf32, #tpu.memory_space<vmem>>, vector<32x1xf32>
    %31 = vector.broadcast %30 : vector<32x1xf32> to vector<32x128xf32>
    %32 = arith.mulf %29, %31 : vector<32x128xf32>
    %cst_23 = arith.constant dense<0.000000e+00> : vector<128xf32>
    %33 = vector.multi_reduction <add>, %32, %cst_23 [0] : vector<32x128xf32> to vector<128xf32>
    %34 = vector.shape_cast %33 : vector<128xf32> to vector<1x128xf32>
    %c0_24 = arith.constant 0 : index
    %c0_25 = arith.constant 0 : index
    %35 = vector.load %arg7[%c0_24, %c0_25] : memref<1x1xf32, #tpu.memory_space<vmem>>, vector<1x1xf32>
    %36 = vector.broadcast %35 : vector<1x1xf32> to vector<1x128xf32>
    %37 = arith.addf %34, %36 : vector<1x128xf32>
    %38 = vector.extract_strided_slice %1 {offsets = [0, 0], sizes = [1, 128], strides = [1, 1]} : vector<4x128xf32> to vector<1x128xf32>
    %39 = arith.addf %38, %37 : vector<1x128xf32>
    %40 = arith.negf %39 : vector<1x128xf32>
    %41 = math.exp %40 : vector<1x128xf32>
    %cst_26 = arith.constant 1.000000e+00 : f32
    %42 = vector.broadcast %cst_26 : f32 to vector<1x128xf32>
    %43 = arith.addf %42, %41 : vector<1x128xf32>
    %44 = arith.divf %42, %43 : vector<1x128xf32>
    %c0_27 = arith.constant 0 : index
    %c1_28 = arith.constant 1 : index
    %45 = vector.load %arg1[%c0_27, %c1_28] : memref<128x4xf32, #tpu.memory_space<vmem>>, vector<128x3xf32>
    %c0_29 = arith.constant 0 : index
    %c1_30 = arith.constant 1 : index
    %46 = vector.load %arg8[%c0_29, %c1_30] : memref<128x4xf32, #tpu.memory_space<vmem>>, vector<128x3xf32>
    tpu.vector_store %arg8[%c0_29, %c1_30], %45 {strides = array<i32>} : memref<128x4xf32, #tpu.memory_space<vmem>>, vector<128x3xf32>,
    %47 = tpu.transpose %44, [1, 0] : vector<1x128xf32> -> vector<128x1xf32>
    %c0_31 = arith.constant 0 : index
    %c0_32 = arith.constant 0 : index
    %48 = vector.load %arg8[%c0_31, %c0_32] : memref<128x4xf32, #tpu.memory_space<vmem>>, vector<128x1xf32>
    tpu.vector_store %arg8[%c0_31, %c0_32], %47 {strides = array<i32>} : memref<128x4xf32, #tpu.memory_space<vmem>>, vector<128x1xf32>,
    return
  }
  func.func @transform_0(%arg0: i32) -> (i32, i32) {
    %c0_i32 = arith.constant 0 : i32
    %c0_i32_0 = arith.constant 0 : i32
    return %arg0, %c0_i32 : i32, i32
  }
  func.func @transform_1(%arg0: i32) -> (i32, i32) {
    %c0_i32 = arith.constant 0 : i32
    %c0_i32_0 = arith.constant 0 : i32
    %c0_i32_1 = arith.constant 0 : i32
    return %c0_i32, %c0_i32_0 : i32, i32
  }
  func.func @transform_2(%arg0: i32) -> (i32, i32) {
    %c0_i32 = arith.constant 0 : i32
    %c0_i32_0 = arith.constant 0 : i32
    %c0_i32_1 = arith.constant 0 : i32
    return %c0_i32, %c0_i32_0 : i32, i32
  }
  func.func @transform_3(%arg0: i32) -> (i32, i32, i32) {
    %c0_i32 = arith.constant 0 : i32
    %c0_i32_0 = arith.constant 0 : i32
    %c0_i32_1 = arith.constant 0 : i32
    %c0_i32_2 = arith.constant 0 : i32
    return %c0_i32, %c0_i32_0, %c0_i32_1 : i32, i32, i32
  }
  func.func @transform_4(%arg0: i32) -> (i32, i32, i32) {
    %c0_i32 = arith.constant 0 : i32
    %c0_i32_0 = arith.constant 0 : i32
    %c0_i32_1 = arith.constant 0 : i32
    %c0_i32_2 = arith.constant 0 : i32
    return %c0_i32, %c0_i32_0, %c0_i32_1 : i32, i32, i32
  }
  func.func @transform_5(%arg0: i32) -> (i32, i32) {
    %c0_i32 = arith.constant 0 : i32
    %c0_i32_0 = arith.constant 0 : i32
    %c0_i32_1 = arith.constant 0 : i32
    return %c0_i32, %c0_i32_0 : i32, i32
  }
  func.func @transform_6(%arg0: i32) -> (i32, i32) {
    %c0_i32 = arith.constant 0 : i32
    %c0_i32_0 = arith.constant 0 : i32
    %c0_i32_1 = arith.constant 0 : i32
    return %c0_i32, %c0_i32_0 : i32, i32
  }
  func.func @transform_7(%arg0: i32) -> (i32, i32) {
    %c0_i32 = arith.constant 0 : i32
    %c0_i32_0 = arith.constant 0 : i32
    return %arg0, %c0_i32 : i32, i32
  }
}

</mosaic_0001>

<llo_original>
// kernel: flow_sigma_forward.1
$region0: #{flow_sigma_forward.1}
  #allocation0 [shape = 'u32[]', space=smem, size = 0x4, offset = 0x4, fixed_abs, tag = 'smem constant byte address 0x4 - core index']
  #allocation1 [shape = 'u32[144,128]{1,0:T(1,128)}', space=vmem, size = 0x12000, scoped, tag = 'internal scratch']
  #allocation2 [shape = 'f32[1,1]{1,0:T(1,128)S(1)}', space=vmem, size = 0x200, scoped, tag = 'scoped memory for flow_sigma_forward.1']
  %s0 = inlined_call_operand.vmem [shape: f32[200,4], index: 0, kind: input, shape index: {}]
  %s1 = inlined_call_operand.vmem [shape: bf16[32,4], index: 1, kind: input, shape index: {}]
  %s2 = inlined_call_operand.vmem [shape: f32[32,1], index: 2, kind: input, shape index: {}]
  %s3 = inlined_call_operand.vmem [shape: bf16[2,32,32], index: 3, kind: input, shape index: {}]
  %s4 = inlined_call_operand.vmem [shape: f32[2,32,1], index: 4, kind: input, shape index: {}]
  %s5 = inlined_call_operand.vmem [shape: f32[32,1], index: 5, kind: input, shape index: {}]
  %s6 = inlined_call_operand.<no memory space> [shape: f32[1,1], index: 6, kind: input, shape index: {}]
  %s7 = inlined_call_operand.vmem [shape: f32[200,4], index: 7, kind: output, shape index: {}]
  %s8 = sld [smem:[#allocation0]]
  $region109: #{flow_sigma_forward.1} parent=0
    _
  %s10 = ssub.s32 1, %s8
  %s11 = scalar_select 0, %s10, %s8
  %v12 = vstv %s6
  %13 = vst [vmem:[#allocation2] sm:$0x1] %v12
  $region1: #{flow_sigma_forward.1} parent=0
    #allocation3 [shape = 'u8[131072]{0}', space=vmem, size = 0x20000, scoped, tag = 'output window, operand 0']
    loop: start=0, step=1, limit=4
    $region2: #{flow_sigma_forward.1} parent=1 // loop_pre_header
      _
    $region3: #{flow_sigma_forward.1} parent=1 // loop_header
      %s15 = sphi 0, %s19
      %p16 = scmp.ge.s32.totalorder %s15, 4
      %s25 = sphi 0, %s27
      %s28 = sphi 0, %s25
      %s29 = sphi 0, %s28
      %s45 = sphi 0, %s29
      %s49 = sphi 0, %s49
      %s51 = sphi 0, %s49
      %s52 = sphi 0, %s51
      %s66 = sphi 0, %s52
      %s70 = sphi 0, %s70
      %s72 = sphi 0, %s70
      %s73 = sphi 0, %s72
      %s87 = sphi 0, %s73
      %s91 = sphi 0, %s91
      %s93 = sphi 0, %s91
      %s94 = sphi 0, %s93
      %s108 = sphi 0, %s94
      %s112 = sphi 0, %s112
      %s114 = sphi 0, %s112
      %s115 = sphi 0, %s114
      %s129 = sphi 0, %s115
      %s133 = sphi 0, %s133
      %s135 = sphi 0, %s133
      %s136 = sphi 0, %s135
      %s150 = sphi 0, %s136
      %s154 = sphi 0, %s154
      %s156 = sphi 0, %s154
      %s157 = sphi 0, %s156
      %s171 = sphi 0, %s157
      %s177 = sphi 0, %s179
      %s180 = sphi 0, %s177
      %s181 = sphi 0, %s180
      %s197 = sphi 0, %s181
    $region4: #{flow_sigma_forward.1} parent=1 // loop_header_branch
      %18 = sbr.rel (%p16) target = $region8
    $region5: #{flow_sigma_forward.1} parent=1 // loop_body
      %s20 = ssub.s32 %s15, 1
      %s21 = ssub.s32 %s15, 2
      %s22 = sadd.s32 %s15, 1
      %s23 = ssub.s32 %s15, %s22
      %p24 = scmp.eq.s32.totalorder %s23, 0
      %s26 = sadd.s32 %s25, 1
      %s27 = scalar_select %p24, %s25, %s26
      %p30 = pneg %p24
      %p31 = scmp.eq.s32.totalorder %s15, 1
      %p32 = por %p30, %p31
      %p33 = scmp.ne.s32.totalorder %s25, %s28
      %p34 = scmp.eq.s32.totalorder %s15, 0
      %p35 = por %p33, %p34
      %p36 = scmp.ne.s32.totalorder %s25, %s28
      %p37 = scmp.eq.s32.totalorder %s20, 1
      %p38 = por %p36, %p37
      %p39 = scmp.ne.s32.totalorder %s28, %s29
      %p40 = scmp.eq.s32.totalorder %s20, 0
      %p41 = por %p39, %p40
      %p42 = scmp.ne.s32.totalorder %s28, %s29
      %p43 = scmp.eq.s32.totalorder %s21, 1
      %p44 = por %p42, %p43
      %p46 = scmp.ne.s32.totalorder %s29, %s45
      %p47 = scmp.eq.s32.totalorder %s21, 0
      %p48 = por %p46, %p47
      %s50 = sadd.s32 %s49, 1
      %p53 = scmp.eq.s32.totalorder %s15, 1
      %p54 = scmp.ne.s32.totalorder %s49, %s51
      %p55 = scmp.eq.s32.totalorder %s15, 0
      %p56 = por %p54, %p55
      %p57 = scmp.ne.s32.totalorder %s49, %s51
      %p58 = scmp.eq.s32.totalorder %s20, 1
      %p59 = por %p57, %p58
      %p60 = scmp.ne.s32.totalorder %s51, %s52
      %p61 = scmp.eq.s32.totalorder %s20, 0
      %p62 = por %p60, %p61
      %p63 = scmp.ne.s32.totalorder %s51, %s52
      %p64 = scmp.eq.s32.totalorder %s21, 1
      %p65 = por %p63, %p64
      %p67 = scmp.ne.s32.totalorder %s52, %s66
      %p68 = scmp.eq.s32.totalorder %s21, 0
      %p69 = por %p67, %p68
      %s71 = sadd.s32 %s70, 1
      %p74 = scmp.eq.s32.totalorder %s15, 1
      %p75 = scmp.ne.s32.totalorder %s70, %s72
      %p76 = scmp.eq.s32.totalorder %s15, 0
      %p77 = por %p75, %p76
      %p78 = scmp.ne.s32.totalorder %s70, %s72
      %p79 = scmp.eq.s32.totalorder %s20, 1
      %p80 = por %p78, %p79
      %p81 = scmp.ne.s32.totalorder %s72, %s73
      %p82 = scmp.eq.s32.totalorder %s20, 0
      %p83 = por %p81, %p82
      %p84 = scmp.ne.s32.totalorder %s72, %s73
      %p85 = scmp.eq.s32.totalorder %s21, 1
      %p86 = por %p84, %p85
      %p88 = scmp.ne.s32.totalorder %s73, %s87
      %p89 = scmp.eq.s32.totalorder %s21, 0
      %p90 = por %p88, %p89
      %s92 = sadd.s32 %s91, 1
      %p95 = scmp.eq.s32.totalorder %s15, 1
      %p96 = scmp.ne.s32.totalorder %s91, %s93
      %p97 = scmp.eq.s32.totalorder %s15, 0
      %p98 = por %p96, %p97
      %p99 = scmp.ne.s32.totalorder %s91, %s93
      %p100 = scmp.eq.s32.totalorder %s20, 1
      %p101 = por %p99, %p100
      %p102 = scmp.ne.s32.totalorder %s93, %s94
      %p103 = scmp.eq.s32.totalorder %s20, 0
      %p104 = por %p102, %p103
      %p105 = scmp.ne.s32.totalorder %s93, %s94
      %p106 = scmp.eq.s32.totalorder %s21, 1
      %p107 = por %p105, %p106
      %p109 = scmp.ne.s32.totalorder %s94, %s108
      %p110 = scmp.eq.s32.totalorder %s21, 0
      %p111 = por %p109, %p110
      %s113 = sadd.s32 %s112, 1
      %p116 = scmp.eq.s32.totalorder %s15, 1
      %p117 = scmp.ne.s32.totalorder %s112, %s114
      %p118 = scmp.eq.s32.totalorder %s15, 0
      %p119 = por %p117, %p118
      %p120 = scmp.ne.s32.totalorder %s112, %s114
      %p121 = scmp.eq.s32.totalorder %s20, 1
      %p122 = por %p120, %p121
      %p123 = scmp.ne.s32.totalorder %s114, %s115
      %p124 = scmp.eq.s32.totalorder %s20, 0
      %p125 = por %p123, %p124
      %p126 = scmp.ne.s32.totalorder %s114, %s115
      %p127 = scmp.eq.s32.totalorder %s21, 1
      %p128 = por %p126, %p127
      %p130 = scmp.ne.s32.totalorder %s115, %s129
      %p131 = scmp.eq.s32.totalorder %s21, 0
      %p132 = por %p130, %p131
      %s134 = sadd.s32 %s133, 1
      %p137 = scmp.eq.s32.totalorder %s15, 1
      %p138 = scmp.ne.s32.totalorder %s133, %s135
      %p139 = scmp.eq.s32.totalorder %s15, 0
      %p140 = por %p138, %p139
      %p141 = scmp.ne.s32.totalorder %s133, %s135
      %p142 = scmp.eq.s32.totalorder %s20, 1
      %p143 = por %p141, %p142
      %p144 = scmp.ne.s32.totalorder %s135, %s136
      %p145 = scmp.eq.s32.totalorder %s20, 0
      %p146 = por %p144, %p145
      %p147 = scmp.ne.s32.totalorder %s135, %s136
      %p148 = scmp.eq.s32.totalorder %s21, 1
      %p149 = por %p147, %p148
      %p151 = scmp.ne.s32.totalorder %s136, %s150
      %p152 = scmp.eq.s32.totalorder %s21, 0
      %p153 = por %p151, %p152
      %s155 = sadd.s32 %s154, 1
      %p158 = scmp.eq.s32.totalorder %s15, 1
      %p159 = scmp.ne.s32.totalorder %s154, %s156
      %p160 = scmp.eq.s32.totalorder %s15, 0
      %p161 = por %p159, %p160
      %p162 = scmp.ne.s32.totalorder %s154, %s156
      %p163 = scmp.eq.s32.totalorder %s20, 1
      %p164 = por %p162, %p163
      %p165 = scmp.ne.s32.totalorder %s156, %s157
      %p166 = scmp.eq.s32.totalorder %s20, 0
      %p167 = por %p165, %p166
      %p168 = scmp.ne.s32.totalorder %s156, %s157
      %p169 = scmp.eq.s32.totalorder %s21, 1
      %p170 = por %p168, %p169
      %p172 = scmp.ne.s32.totalorder %s157, %s171
      %p173 = scmp.eq.s32.totalorder %s21, 0
      %p174 = por %p172, %p173
      %s175 = ssub.s32 %s15, %s22
      %p176 = scmp.eq.s32.totalorder %s175, 0
      %s178 = sadd.s32 %s177, 1
      %s179 = scalar_select %p176, %s177, %s178
      %p182 = pneg %p176
      %p183 = scmp.eq.s32.totalorder %s15, 1
      %p184 = por %p182, %p183
      %p185 = scmp.ne.s32.totalorder %s177, %s180
      %p186 = scmp.eq.s32.totalorder %s15, 0
      %p187 = por %p185, %p186
      %p188 = scmp.ne.s32.totalorder %s177, %s180
      %p189 = scmp.eq.s32.totalorder %s20, 1
      %p190 = por %p188, %p189
      %p191 = scmp.ne.s32.totalorder %s180, %s181
      %p192 = scmp.eq.s32.totalorder %s20, 0
      %p193 = por %p191, %p192
      %p194 = scmp.ne.s32.totalorder %s180, %s181
      %p195 = scmp.eq.s32.totalorder %s21, 1
      %p196 = por %p194, %p195
      %p198 = scmp.ne.s32.totalorder %s181, %s197
      %p199 = scmp.eq.s32.totalorder %s21, 0
      %p200 = por %p198, %p199
      %p201 = scmp.le.s32.totalorder 1, %s15
      %p202 = scmp.lt.s32.totalorder %s15, 3
      %p203 = pnand %p201, %p202
      %p204 = pneg %p203
      // Predicated region
      $region9: #{flow_sigma_forward.1} parent=5 // pred_check
        _
      $region10: #{flow_sigma_forward.1} parent=5 // pred_check_branch
        %206 = sbr.rel (%p203) target = $region12
      $region11: #{flow_sigma_forward.1} parent=5 // pred_region
        %s207 = ssub.s32 %s15, 1
        // Predicated region
        $region13: #{flow_sigma_forward.1} parent=11 // pred_check
          %p208 = pneg %p62
        $region14: #{flow_sigma_forward.1} parent=11 // pred_check_branch
          %210 = sbr.rel (%p208) target = $region16
        $region15: #{flow_sigma_forward.1} parent=11 // pred_region
          _
        $region16: #{flow_sigma_forward.1} parent=11 // pred_fallthru
          _
        // Predicated region
        $region17: #{flow_sigma_forward.1} parent=11 // pred_check
          %p211 = pneg %p83
        $region18: #{flow_sigma_forward.1} parent=11 // pred_check_branch
          %213 = sbr.rel (%p211) target = $region20
        $region19: #{flow_sigma_forward.1} parent=11 // pred_region
          _
        $region20: #{flow_sigma_forward.1} parent=11 // pred_fallthru
          _
        // Predicated region
        $region21: #{flow_sigma_forward.1} parent=11 // pred_check
          %p214 = pneg %p104
        $region22: #{flow_sigma_forward.1} parent=11 // pred_check_branch
          %216 = sbr.rel (%p214) target = $region24
        $region23: #{flow_sigma_forward.1} parent=11 // pred_region
          _
        $region24: #{flow_sigma_forward.1} parent=11 // pred_fallthru
          _
        // Predicated region
        $region25: #{flow_sigma_forward.1} parent=11 // pred_check
          %p217 = pneg %p125
        $region26: #{flow_sigma_forward.1} parent=11 // pred_check_branch
          %219 = sbr.rel (%p217) target = $region28
        $region27: #{flow_sigma_forward.1} parent=11 // pred_region
          _
        $region28: #{flow_sigma_forward.1} parent=11 // pred_fallthru
          _
        // Predicated region
        $region29: #{flow_sigma_forward.1} parent=11 // pred_check
          %p220 = pneg %p146
        $region30: #{flow_sigma_forward.1} parent=11 // pred_check_branch
          %222 = sbr.rel (%p220) target = $region32
        $region31: #{flow_sigma_forward.1} parent=11 // pred_region
          _
        $region32: #{flow_sigma_forward.1} parent=11 // pred_fallthru
          _
        // Predicated region
        $region33: #{flow_sigma_forward.1} parent=11 // pred_check
          %p223 = pneg %p167
        $region34: #{flow_sigma_forward.1} parent=11 // pred_check_branch
          %225 = sbr.rel (%p223) target = $region36
        $region35: #{flow_sigma_forward.1} parent=11 // pred_region
          _
        $region36: #{flow_sigma_forward.1} parent=11 // pred_fallthru
          _
      $region12: #{flow_sigma_forward.1} parent=5 // pred_fallthru
        _
      %p226 = scmp.lt.s32.totalorder %s15, 2
      // Predicated region
      $region37: #{flow_sigma_forward.1} parent=5 // pred_check
        %p227 = pneg %p226
      $region38: #{flow_sigma_forward.1} parent=5 // pred_check_branch
        %229 = sbr.rel (%p227) target = $region40
      $region39: #{flow_sigma_forward.1} parent=5 // pred_region
        // Predicated region
        $region41: #{flow_sigma_forward.1} parent=39 // pred_check
          %p230 = pneg %p35
        $region42: #{flow_sigma_forward.1} parent=39 // pred_check_branch
          %232 = sbr.rel (%p230) target = $region44
        $region43: #{flow_sigma_forward.1} parent=39 // pred_region
          %s233 = smul.u32 16, %s15
          %s234 = ssub.s32 25, %s233
          %p235 = scmp.lt.s32.totalorder %s234, 16
          %s236 = scalar_select %p235, %s234, 16
          %s237 = smul.u32 128, %s236
          %p238 = scmp.lt.s32.totalorder %s233, 24
          %s239 = scalar_select %p238, %s233, 24
          %s240 = smul.addr %s239, 8
          %s241 = scalar_lea.vmem %s0, %s240
          %s242 = smul.u32 16, %s15
          %s243 = ssub.s32 25, %s242
          %p244 = scmp.lt.s32.totalorder %s243, 16
          %s245 = scalar_select %p244, %s243, 16
          %s246 = smul.u32 128, %s245
        $region44: #{flow_sigma_forward.1} parent=39 // pred_fallthru
          _
      $region40: #{flow_sigma_forward.1} parent=5 // pred_fallthru
        _
      %p247 = scmp.le.s32.totalorder 1, %s15
      %p248 = scmp.lt.s32.totalorder %s15, 3
      %p249 = pnand %p247, %p248
      %p250 = pneg %p249
      // Predicated region
      $region45: #{flow_sigma_forward.1} parent=5 // pred_check
        _
      $region46: #{flow_sigma_forward.1} parent=5 // pred_check_branch
        %252 = sbr.rel (%p249) target = $region48
      $region47: #{flow_sigma_forward.1} parent=5 // pred_region
        %s253 = ssub.s32 %s15, 1
        %s254 = smul.u32 16, %s20
        %s255 = ssub.s32 25, %s254
        %p256 = scmp.lt.s32.totalorder %s255, 16
        %s257 = scalar_select %p256, %s255, 16
        %s258 = smul.u32 128, %s257
        %p259 = scmp.lt.s32.totalorder %s254, 24
        %s260 = scalar_select %p259, %s254, 24
        %s261 = smul.addr %s260, 8
        %s262 = scalar_lea.vmem %s0, %s261
        %p263 = pneg %p41
        %p264 = pneg %p38
        %p265 = pneg %p62
        %p266 = pneg %p59
        %p267 = pneg %p83
        %p268 = pneg %p80
        %p269 = pneg %p104
        %p270 = pneg %p101
        %p271 = pneg %p125
        %p272 = pneg %p122
        %p273 = pneg %p146
        %p274 = pneg %p143
        %p275 = pneg %p167
        %p276 = pneg %p164
        %p277 = pneg %p193
        %p278 = pneg %p190
        %s279 = sand.u32 %s180, 1
        %s280 = sand.u32 %s180, 1
        %s281 = smul.addr %s280, 128
        %s282 = scalar_lea.vmem [#allocation3], %s281
        %s283 = smul.u32 16, %s20
        %s284 = ssub.s32 25, %s283
        %p285 = scmp.lt.s32.totalorder %s284, 16
        %s286 = scalar_select %p285, %s284, 16
        %s287 = smul.u32 128, %s286
        %p288 = scmp.lt.s32.totalorder %s283, 24
        %s289 = scalar_select %p288, %s283, 24
        %s290 = smul.addr %s289, 8
        %s291 = scalar_lea.vmem %s0, %s290
        %s292 = smul.u32 16, %s20
        %s293 = ssub.s32 25, %s292
        %p294 = scmp.lt.s32.totalorder %s293, 16
        %s295 = scalar_select %p294, %s293, 16
        %s296 = smul.u32 128, %s295
        %s297 = smul.u32 16, %s20
        %s298 = ssub.s32 25, %s297
        %p299 = scmp.lt.s32.totalorder %s298, 16
        %s300 = scalar_select %p299, %s298, 16
        %s301 = smul.u32 128, %s300
        %v303 = vld [vmem:[%s291] sm:$0xff]
        %v304 = vld [vmem:[%s291 + $0x8] sm:$0xff]
        %v305 = vld [vmem:[%s291 + $0x10] sm:$0xff]
        %v306 = vld [vmem:[%s291 + $0x18] sm:$0xff]
        %v307 = vld [vmem:[%s291 + $0x20] sm:$0xff]
        %v308 = vld [vmem:[%s291 + $0x28] sm:$0xff]
        %v309 = vld [vmem:[%s291 + $0x30] sm:$0xff]
        %v310 = vld [vmem:[%s291 + $0x38] sm:$0xff]
        %v311 = vld [vmem:[%s291 + $0x40] sm:$0xff]
        %v312 = vld [vmem:[%s291 + $0x48] sm:$0xff]
        %v313 = vld [vmem:[%s291 + $0x50] sm:$0xff]
        %v314 = vld [vmem:[%s291 + $0x58] sm:$0xff]
        %v315 = vld [vmem:[%s291 + $0x60] sm:$0xff]
        %v316 = vld [vmem:[%s291 + $0x68] sm:$0xff]
        %v317 = vld [vmem:[%s291 + $0x70] sm:$0xff]
        %v318 = vld [vmem:[%s291 + $0x78] sm:$0xff]
        %319 = vxpose.xlu0.b32.start [1/16] %v303, 128
        %320 = vxpose.xlu0.b32.cont [2/16] %v304, 128
        %321 = vxpose.xlu0.b32.cont [3/16] %v305, 128
        %322 = vxpose.xlu0.b32.cont [4/16] %v306, 128
        %323 = vxpose.xlu0.b32.cont [5/16] %v307, 128
        %324 = vxpose.xlu0.b32.cont [6/16] %v308, 128
        %325 = vxpose.xlu0.b32.cont [7/16] %v309, 128
        %326 = vxpose.xlu0.b32.cont [8/16] %v310, 128
        %327 = vxpose.xlu0.b32.cont [9/16] %v311, 128
        %328 = vxpose.xlu0.b32.cont [10/16] %v312, 128
        %329 = vxpose.xlu0.b32.cont [11/16] %v313, 128
        %330 = vxpose.xlu0.b32.cont [12/16] %v314, 128
        %331 = vxpose.xlu0.b32.cont [13/16] %v315, 128
        %332 = vxpose.xlu0.b32.cont [14/16] %v316, 128
        %333 = vxpose.xlu0.b32.cont [15/16] %v317, 128
        %334 = vxpose.xlu0.b32.end [16/16] %v318, 128
        %v335 = vpop.trf.xlu0
        %v336 = vpop.trf.xlu0
        %v337 = vpop.trf.xlu0
        %v338 = vpop.trf.xlu0
        %v339 = vpop.trf.xlu0
        %v340 = vpop.trf.xlu0
        %v341 = vpop.trf.xlu0
        %v342 = vpop.trf.xlu0
        %v343 = vpop.trf.xlu0
        %v344 = vpop.trf.xlu0
        %v345 = vpop.trf.xlu0
        %v346 = vpop.trf.xlu0
        %v347 = vpop.trf.xlu0
        %v348 = vpop.trf.xlu0
        %v349 = vpop.trf.xlu0
        %v350 = vpop.trf.xlu0
        %v351 = vpack.c.bf16 %v335, %v335
        %v352 = vld [vmem:[%s1] sm:$0xf]
        %v353 = vld [vmem:[%s1 + $0x4] sm:$0xf]
        %v354 = vld [vmem:[%s1 + $0x8] sm:$0xf]
        %v355 = vld [vmem:[%s1 + $0xc] sm:$0xf]
        %v356 = vld [vmem:[%s2] sm:$0xff]
        %v357 = vld [vmem:[%s2 + $0x8] sm:$0xff]
        %v358 = vld [vmem:[%s2 + $0x10] sm:$0xff]
        %v359 = vld [vmem:[%s2 + $0x18] sm:$0xff]
        %361 = vset.pattern.permute.xlu0 0
        %362 = vperm.xlu0 %361, %v356
        %v363 = vpop.permute.xlu0 %362
        %366 = vset.pattern.permute.xlu0 0
        %367 = vperm.xlu0 %366, %v357
        %v368 = vpop.permute.xlu0 %367
        %371 = vset.pattern.permute.xlu0 0
        %372 = vperm.xlu0 %371, %v358
        %v373 = vpop.permute.xlu0 %372
        %376 = vset.pattern.permute.xlu0 0
        %377 = vperm.xlu0 %376, %v359
        %v378 = vpop.permute.xlu0 %377
        %v384 = vunpack.c.l.b16 %v352
        %v385 = vunpack.c.l.b16 %v353
        %v386 = vunpack.c.l.b16 %v354
        %v387 = vunpack.c.l.b16 %v355
        %v388 = vpack.c.b16 %v385, %v384
        %v389 = vpack.c.b16 %v387, %v386
        %vm390 = vcmask 31744
        %v392 = vsel %vm390, %v388, 0
        %v395 = vsel %vm390, %v389, 0
        %vm397 = vcmask 1041408
        %v399 = vsel %vm397, %v351, 0
        %401 = vmatprep.subr.bf16.mxu0 0
        %402 = vmatpush1.bf16.msra.mxu0 0
        %403 = vmatprep.subr.bf16.mxu0 0
        %404 = vmatpush1.bf16.msra.mxu0 0
        %405 = vmatprep.subr.bf16.mxu0 0
        %406 = vmatpush1.bf16.msra.mxu0 0
        %407 = vmatprep.subr.bf16.mxu0 0
        %408 = vmatpush1.bf16.msra.mxu0 0
        %409 = vmatprep.subr.bf16.mxu0 0
        %410 = vmatpush1.bf16.msra.mxu0 0
        %411 = vmatprep.subr.bf16.mxu0 0
        %412 = vmatpush1.bf16.msra.mxu0 0
        %413 = vmatprep.subr.bf16.mxu0 0
        %414 = vmatpush1.bf16.msra.mxu0 0
        %415 = vmatprep.subr.bf16.mxu0 0
        %416 = vmatpush1.bf16.msra.mxu0 %v399
        %417 = vmatprep.subr.bf16.mxu0 0
        %418 = vmatpush2.bf16.msra.mxu0 0
        %419 = vmatprep.subr.bf16.mxu0 0
        %420 = vmatpush2.bf16.msra.mxu0 0
        %421 = vmatprep.subr.bf16.mxu0 0
        %422 = vmatpush2.bf16.msra.mxu0 0
        %423 = vmatprep.subr.bf16.mxu0 0
        %424 = vmatpush2.bf16.msra.mxu0 0
        %425 = vmatprep.subr.bf16.mxu0 0
        %426 = vmatpush2.bf16.msra.mxu0 0
        %427 = vmatprep.subr.bf16.mxu0 0
        %428 = vmatpush2.bf16.msra.mxu0 0
        %429 = vmatprep.subr.bf16.mxu0 0
        %430 = vmatpush2.bf16.msra.mxu0 0
        %431 = vmatprep.subr.bf16.mxu0 0
        %432 = vmatpush2.bf16.msra.mxu0 0
        %433 = vmatprep.mubr.bf16.mxu0 0
        %434 = vmatmul.mubr.bf16.gmra.mxu0 %v392
        %v435 = vpop.f32.mrf.mxu0
        %v436 = vadd.f32 %v363, %v435
        %v437 = vpop.f32.mrf.mxu0
        %v438 = vpop.f32.mrf.mxu0
        %v439 = vadd.f32 %v368, %v438
        %v440 = vpop.f32.mrf.mxu0
        %441 = vmatprep.mubr.bf16.mxu0 0
        %442 = vmatmul.mubr.bf16.gmra.mxu0 %v395
        %v443 = vpop.f32.mrf.mxu0
        %v444 = vadd.f32 %v373, %v443
        %v445 = vpop.f32.mrf.mxu0
        %v446 = vpop.f32.mrf.mxu0
        %v447 = vadd.f32 %v378, %v446
        %v448 = vpop.f32.mrf.mxu0
        %449 = vdwg.mxu0
        %v450 = vmax.f32 %v436, 0.0
        %v451 = vmax.f32 %v439, 0.0
        %v452 = vmax.f32 %v444, 0.0
        %v453 = vmax.f32 %v447, 0.0
        %v454 = vpack.c.bf16 %v451, %v450
        %v455 = vpack.c.bf16 %v453, %v452
        %v456 = vld [vmem:[%s3] sm:$0xf]
        %v457 = vld [vmem:[%s3 + $0x4] sm:$0xf]
        %v458 = vld [vmem:[%s3 + $0x8] sm:$0xf]
        %v459 = vld [vmem:[%s3 + $0xc] sm:$0xf]
        %v460 = vld [vmem:[%s4] sm:$0xff]
        %v461 = vld [vmem:[%s4 + $0x8] sm:$0xff]
        %v462 = vld [vmem:[%s4 + $0x10] sm:$0xff]
        %v463 = vld [vmem:[%s4 + $0x18] sm:$0xff]
        %465 = vset.pattern.permute.xlu0 0
        %466 = vperm.xlu0 %465, %v460
        %v467 = vpop.permute.xlu0 %466
        %470 = vset.pattern.permute.xlu0 0
        %471 = vperm.xlu0 %470, %v461
        %v472 = vpop.permute.xlu0 %471
        %475 = vset.pattern.permute.xlu0 0
        %476 = vperm.xlu0 %475, %v462
        %v477 = vpop.permute.xlu0 %476
        %480 = vset.pattern.permute.xlu0 0
        %481 = vperm.xlu0 %480, %v463
        %v482 = vpop.permute.xlu0 %481
        %v488 = vunpack.c.l.b16 %v456
        %v489 = vunpack.c.l.b16 %v457
        %v490 = vunpack.c.l.b16 %v458
        %v491 = vunpack.c.l.b16 %v459
        %v492 = vpack.c.b16 %v489, %v488
        %v493 = vpack.c.b16 %v491, %v490
        %vm494 = vcmask 261120
        %v496 = vsel %vm494, %v492, 0
        %v499 = vsel %vm494, %v493, 0
        %501 = vmatprep.subr.bf16.mxu0 0
        %502 = vmatpush1.bf16.msra.mxu0 0
        %503 = vmatprep.subr.bf16.mxu0 0
        %504 = vmatpush1.bf16.msra.mxu0 0
        %505 = vmatprep.subr.bf16.mxu0 0
        %506 = vmatpush1.bf16.msra.mxu0 0
        %507 = vmatprep.subr.bf16.mxu0 0
        %508 = vmatpush1.bf16.msra.mxu0 0
        %509 = vmatprep.subr.bf16.mxu0 0
        %510 = vmatpush1.bf16.msra.mxu0 0
        %511 = vmatprep.subr.bf16.mxu0 0
        %512 = vmatpush1.bf16.msra.mxu0 0
        %513 = vmatprep.subr.bf16.mxu0 0
        %514 = vmatpush1.bf16.msra.mxu0 %v455
        %515 = vmatprep.subr.bf16.mxu0 0
        %516 = vmatpush1.bf16.msra.mxu0 %v454
        %517 = vmatprep.subr.bf16.mxu0 0
        %518 = vmatpush2.bf16.msra.mxu0 0
        %519 = vmatprep.subr.bf16.mxu0 0
        %520 = vmatpush2.bf16.msra.mxu0 0
        %521 = vmatprep.subr.bf16.mxu0 0
        %522 = vmatpush2.bf16.msra.mxu0 0
        %523 = vmatprep.subr.bf16.mxu0 0
        %524 = vmatpush2.bf16.msra.mxu0 0
        %525 = vmatprep.subr.bf16.mxu0 0
        %526 = vmatpush2.bf16.msra.mxu0 0
        %527 = vmatprep.subr.bf16.mxu0 0
        %528 = vmatpush2.bf16.msra.mxu0 0
        %529 = vmatprep.subr.bf16.mxu0 0
        %530 = vmatpush2.bf16.msra.mxu0 0
        %531 = vmatprep.subr.bf16.mxu0 0
        %532 = vmatpush2.bf16.msra.mxu0 0
        %533 = vmatprep.mubr.bf16.mxu0 0
        %534 = vmatmul.mubr.bf16.gmra.mxu0 %v496
        %v535 = vpop.f32.mrf.mxu0
        %v536 = vadd.f32 %v467, %v535
        %v537 = vpop.f32.mrf.mxu0
        %v538 = vpop.f32.mrf.mxu0
        %v539 = vadd.f32 %v472, %v538
        %v540 = vpop.f32.mrf.mxu0
        %541 = vmatprep.mubr.bf16.mxu0 0
        %542 = vmatmul.mubr.bf16.gmra.mxu0 %v499
        %v543 = vpop.f32.mrf.mxu0
        %v544 = vadd.f32 %v477, %v543
        %v545 = vpop.f32.mrf.mxu0
        %v546 = vpop.f32.mrf.mxu0
        %v547 = vadd.f32 %v482, %v546
        %v548 = vpop.f32.mrf.mxu0
        %549 = vdwg.mxu0
        %v550 = vmax.f32 %v536, 0.0
        %v551 = vmax.f32 %v539, 0.0
        %v552 = vmax.f32 %v544, 0.0
        %v553 = vmax.f32 %v547, 0.0
        %v554 = vpack.c.bf16 %v551, %v550
        %v555 = vpack.c.bf16 %v553, %v552
        %s556 = scalar_lea.vmem %s3, 16
        %v557 = vld [vmem:[%s556] sm:$0xf]
        %v558 = vld [vmem:[%s556 + $0x4] sm:$0xf]
        %v559 = vld [vmem:[%s556 + $0x8] sm:$0xf]
        %v560 = vld [vmem:[%s556 + $0xc] sm:$0xf]
        %s561 = scalar_lea.vmem %s4, 32
        %v562 = vld [vmem:[%s561] sm:$0xff]
        %v563 = vld [vmem:[%s561 + $0x8] sm:$0xff]
        %v564 = vld [vmem:[%s561 + $0x10] sm:$0xff]
        %v565 = vld [vmem:[%s561 + $0x18] sm:$0xff]
        %567 = vset.pattern.permute.xlu0 0
        %568 = vperm.xlu0 %567, %v562
        %v569 = vpop.permute.xlu0 %568
        %572 = vset.pattern.permute.xlu0 0
        %573 = vperm.xlu0 %572, %v563
        %v574 = vpop.permute.xlu0 %573
        %577 = vset.pattern.permute.xlu0 0
        %578 = vperm.xlu0 %577, %v564
        %v579 = vpop.permute.xlu0 %578
        %582 = vset.pattern.permute.xlu0 0
        %583 = vperm.xlu0 %582, %v565
        %v584 = vpop.permute.xlu0 %583
        %v590 = vunpack.c.l.b16 %v557
        %v591 = vunpack.c.l.b16 %v558
        %v592 = vunpack.c.l.b16 %v559
        %v593 = vunpack.c.l.b16 %v560
        %v594 = vpack.c.b16 %v591, %v590
        %v595 = vpack.c.b16 %v593, %v592
        %v597 = vsel %vm494, %v594, 0
        %v600 = vsel %vm494, %v595, 0
        %602 = vmatprep.subr.bf16.mxu0 0
        %603 = vmatpush1.bf16.msra.mxu0 0
        %604 = vmatprep.subr.bf16.mxu0 0
        %605 = vmatpush1.bf16.msra.mxu0 0
        %606 = vmatprep.subr.bf16.mxu0 0
        %607 = vmatpush1.bf16.msra.mxu0 0
        %608 = vmatprep.subr.bf16.mxu0 0
        %609 = vmatpush1.bf16.msra.mxu0 0
        %610 = vmatprep.subr.bf16.mxu0 0
        %611 = vmatpush1.bf16.msra.mxu0 0
        %612 = vmatprep.subr.bf16.mxu0 0
        %613 = vmatpush1.bf16.msra.mxu0 0
        %614 = vmatprep.subr.bf16.mxu0 0
        %615 = vmatpush1.bf16.msra.mxu0 %v555
        %616 = vmatprep.subr.bf16.mxu0 0
        %617 = vmatpush1.bf16.msra.mxu0 %v554
        %618 = vmatprep.subr.bf16.mxu0 0
        %619 = vmatpush2.bf16.msra.mxu0 0
        %620 = vmatprep.subr.bf16.mxu0 0
        %621 = vmatpush2.bf16.msra.mxu0 0
        %622 = vmatprep.subr.bf16.mxu0 0
        %623 = vmatpush2.bf16.msra.mxu0 0
        %624 = vmatprep.subr.bf16.mxu0 0
        %625 = vmatpush2.bf16.msra.mxu0 0
        %626 = vmatprep.subr.bf16.mxu0 0
        %627 = vmatpush2.bf16.msra.mxu0 0
        %628 = vmatprep.subr.bf16.mxu0 0
        %629 = vmatpush2.bf16.msra.mxu0 0
        %630 = vmatprep.subr.bf16.mxu0 0
        %631 = vmatpush2.bf16.msra.mxu0 0
        %632 = vmatprep.subr.bf16.mxu0 0
        %633 = vmatpush2.bf16.msra.mxu0 0
        %634 = vmatprep.mubr.bf16.mxu0 0
        %635 = vmatmul.mubr.bf16.gmra.mxu0 %v597
        %v636 = vpop.f32.mrf.mxu0
        %v637 = vadd.f32 %v569, %v636
        %v638 = vpop.f32.mrf.mxu0
        %v639 = vpop.f32.mrf.mxu0
        %v640 = vadd.f32 %v574, %v639
        %v641 = vpop.f32.mrf.mxu0
        %642 = vmatprep.mubr.bf16.mxu0 0
        %643 = vmatmul.mubr.bf16.gmra.mxu0 %v600
        %v644 = vpop.f32.mrf.mxu0
        %v645 = vadd.f32 %v579, %v644
        %v646 = vpop.f32.mrf.mxu0
        %v647 = vpop.f32.mrf.mxu0
        %v648 = vadd.f32 %v584, %v647
        %v649 = vpop.f32.mrf.mxu0
        %650 = vdwg.mxu0
        %v651 = vmax.f32 %v637, 0.0
        %v652 = vmax.f32 %v640, 0.0
        %v653 = vmax.f32 %v645, 0.0
        %v654 = vmax.f32 %v648, 0.0
        %v655 = vld [vmem:[%s5] sm:$0xff]
        %v656 = vld [vmem:[%s5 + $0x8] sm:$0xff]
        %v657 = vld [vmem:[%s5 + $0x10] sm:$0xff]
        %v658 = vld [vmem:[%s5 + $0x18] sm:$0xff]
        %660 = vset.pattern.permute.xlu0 0
        %661 = vperm.xlu0 %660, %v655
        %v662 = vpop.permute.xlu0 %661
        %665 = vset.pattern.permute.xlu0 0
        %666 = vperm.xlu0 %665, %v656
        %v667 = vpop.permute.xlu0 %666
        %670 = vset.pattern.permute.xlu0 0
        %671 = vperm.xlu0 %670, %v657
        %v672 = vpop.permute.xlu0 %671
        %675 = vset.pattern.permute.xlu0 0
        %676 = vperm.xlu0 %675, %v658
        %v677 = vpop.permute.xlu0 %676
        %v679 = vmul.f32 %v651, %v662
        %v680 = vmul.f32 %v652, %v667
        %v681 = vmul.f32 %v653, %v672
        %v682 = vmul.f32 %v654, %v677
        %v683 = vadd.f32 %v679, %v680
        %v684 = vadd.f32 %v683, %v681
        %v685 = vadd.f32 %v684, %v682
        %v686 = vrot.slane %v685, 4
        %v687 = vadd.f32 %v685, %v686
        %v688 = vrot.slane %v687, 2
        %v689 = vadd.f32 %v687, %v688
        %v690 = vrot.slane %v689, 1
        %v691 = vadd.f32 %v689, %v690
        %v692 = vld [vmem:[#allocation2] sm:$0x1]
        %694 = vset.pattern.permute.xlu0 0
        %695 = vperm.xlu0 %694, %v692
        %v696 = vpop.permute.xlu0 %695
        %v698 = vlaneseq
        %v699 = vshrl.u32 %v698, 7
        %v700 = vsub.s32 0, %v699
        %v701 = vrot.slane %v696, %v700
        %v702 = vadd.f32 %v691, %v701
        %v703 = vadd.f32 %v335, %v702
        %v704 = vxor.u32 %v703, 2147483648
        %v705 = vmul.f32 %v704, 1.442695
        %v706 = vpow.pop %v705
        %v707 = vadd.f32 %v706, 1.0
        %v708 = vrcp.pop %v707
        %v709 = vmul.f32 1.0, %v708
        %vm710 = vcmask 31752
        %711 = vst.msk [vmem:[%s282] sm:$0xff] %vm710, %v303
        %712 = vst.msk [vmem:[%s282 + $0x8] sm:$0xff] %vm710, %v304
        %713 = vst.msk [vmem:[%s282 + $0x10] sm:$0xff] %vm710, %v305
        %714 = vst.msk [vmem:[%s282 + $0x18] sm:$0xff] %vm710, %v306
        %715 = vst.msk [vmem:[%s282 + $0x20] sm:$0xff] %vm710, %v307
        %716 = vst.msk [vmem:[%s282 + $0x28] sm:$0xff] %vm710, %v308
        %717 = vst.msk [vmem:[%s282 + $0x30] sm:$0xff] %vm710, %v309
        %718 = vst.msk [vmem:[%s282 + $0x38] sm:$0xff] %vm710, %v310
        %719 = vst.msk [vmem:[%s282 + $0x40] sm:$0xff] %vm710, %v311
        %720 = vst.msk [vmem:[%s282 + $0x48] sm:$0xff] %vm710, %v312
        %721 = vst.msk [vmem:[%s282 + $0x50] sm:$0xff] %vm710, %v313
        %722 = vst.msk [vmem:[%s282 + $0x58] sm:$0xff] %vm710, %v314
        %723 = vst.msk [vmem:[%s282 + $0x60] sm:$0xff] %vm710, %v315
        %724 = vst.msk [vmem:[%s282 + $0x68] sm:$0xff] %vm710, %v316
        %725 = vst.msk [vmem:[%s282 + $0x70] sm:$0xff] %vm710, %v317
        %726 = vst.msk [vmem:[%s282 + $0x78] sm:$0xff] %vm710, %v318
        %727 = vxpose.xlu0.b32.start [1/16] %v709, 128
        %728 = vxpose.xlu0.b32.cont [2/16] 0.0, 128
        %729 = vxpose.xlu0.b32.cont [3/16] 0.0, 128
        %730 = vxpose.xlu0.b32.cont [4/16] 0.0, 128
        %731 = vxpose.xlu0.b32.cont [5/16] 0.0, 128
        %732 = vxpose.xlu0.b32.cont [6/16] 0.0, 128
        %733 = vxpose.xlu0.b32.cont [7/16] 0.0, 128
        %734 = vxpose.xlu0.b32.cont [8/16] 0.0, 128
        %735 = vxpose.xlu0.b32.cont [9/16] 0.0, 128
        %736 = vxpose.xlu0.b32.cont [10/16] 0.0, 128
        %737 = vxpose.xlu0.b32.cont [11/16] 0.0, 128
        %738 = vxpose.xlu0.b32.cont [12/16] 0.0, 128
        %739 = vxpose.xlu0.b32.cont [13/16] 0.0, 128
        %740 = vxpose.xlu0.b32.cont [14/16] 0.0, 128
        %741 = vxpose.xlu0.b32.cont [15/16] 0.0, 128
        %742 = vxpose.xlu0.b32.end [16/16] 0.0, 128
        %v743 = vpop.trf.xlu0
        %v744 = vpop.trf.xlu0
        %v745 = vpop.trf.xlu0
        %v746 = vpop.trf.xlu0
        %v747 = vpop.trf.xlu0
        %v748 = vpop.trf.xlu0
        %v749 = vpop.trf.xlu0
        %v750 = vpop.trf.xlu0
        %v751 = vpop.trf.xlu0
        %v752 = vpop.trf.xlu0
        %v753 = vpop.trf.xlu0
        %v754 = vpop.trf.xlu0
        %v755 = vpop.trf.xlu0
        %v756 = vpop.trf.xlu0
        %v757 = vpop.trf.xlu0
        %v758 = vpop.trf.xlu0
        %vm759 = vcmask 7168
        %760 = vst.msk [vmem:[%s282] sm:$0xff] %vm759, %v743
        %761 = vst.msk [vmem:[%s282 + $0x8] sm:$0xff] %vm759, %v744
        %762 = vst.msk [vmem:[%s282 + $0x10] sm:$0xff] %vm759, %v745
        %763 = vst.msk [vmem:[%s282 + $0x18] sm:$0xff] %vm759, %v746
        %764 = vst.msk [vmem:[%s282 + $0x20] sm:$0xff] %vm759, %v747
        %765 = vst.msk [vmem:[%s282 + $0x28] sm:$0xff] %vm759, %v748
        %766 = vst.msk [vmem:[%s282 + $0x30] sm:$0xff] %vm759, %v749
        %767 = vst.msk [vmem:[%s282 + $0x38] sm:$0xff] %vm759, %v750
        %768 = vst.msk [vmem:[%s282 + $0x40] sm:$0xff] %vm759, %v751
        %769 = vst.msk [vmem:[%s282 + $0x48] sm:$0xff] %vm759, %v752
        %770 = vst.msk [vmem:[%s282 + $0x50] sm:$0xff] %vm759, %v753
        %771 = vst.msk [vmem:[%s282 + $0x58] sm:$0xff] %vm759, %v754
        %772 = vst.msk [vmem:[%s282 + $0x60] sm:$0xff] %vm759, %v755
        %773 = vst.msk [vmem:[%s282 + $0x68] sm:$0xff] %vm759, %v756
        %774 = vst.msk [vmem:[%s282 + $0x70] sm:$0xff] %vm759, %v757
        %775 = vst.msk [vmem:[%s282 + $0x78] sm:$0xff] %vm759, %v758
        %s776 = sand.u32 %s180, 1
        %s777 = sand.u32 %s180, 1
        %s778 = smul.addr %s777, 128
        %s779 = scalar_lea.vmem [#allocation3], %s778
        // Predicated region
        $region49: #{flow_sigma_forward.1} parent=47 // pred_check
          %p780 = pneg %p190
        $region50: #{flow_sigma_forward.1} parent=47 // pred_check_branch
          %782 = sbr.rel (%p780) target = $region52
        $region51: #{flow_sigma_forward.1} parent=47 // pred_region
          %s783 = smul.u32 16, %s20
          %s784 = ssub.s32 25, %s783
          %p785 = scmp.lt.s32.totalorder %s784, 16
          %s786 = scalar_select %p785, %s784, 16
          %s787 = smul.u32 128, %s786
          %p788 = scmp.ne.s32.totalorder 0, %s787
          %s789 = smul.addr %s783, 8
          %s790 = scalar_lea.vmem %s7, %s789
          // Predicated region
          $region53: #{flow_sigma_forward.1} parent=51 // pred_check
            %p791 = pneg %p788
          $region54: #{flow_sigma_forward.1} parent=51 // pred_check_branch
            %793 = sbr.rel (%p791) target = $region56
          $region55: #{flow_sigma_forward.1} parent=51 // pred_region
            // Predicated region
            $region57: #{flow_sigma_forward.1} parent=55 // pred_check
              _
            $region58: #{flow_sigma_forward.1} parent=55 // pred_check_branch
              %795 = sbr.rel (0) target = $region60
            $region59: #{flow_sigma_forward.1} parent=55 // pred_region
              // Predicated region
              $region79: #{flow_sigma_forward.1} parent=59 // pred_check
                _
              $region80: #{flow_sigma_forward.1} parent=59 // pred_check_branch
                %875 = sbr.rel (0) target = $region82
              $region81: #{flow_sigma_forward.1} parent=59 // pred_region
                %s876 = sshrl.u32 %s786, 4
                // While loop
                $region83: #{flow_sigma_forward.1} parent=81 // loop_pre_header
                  _
                $region84: #{flow_sigma_forward.1} parent=81 // loop_header
                  %s878 = sphi 0, %s880
                  %p879 = scmp.ge.s32.totalorder %s878, %s876
                  %s883 = sphi 0, %s920
                  %s884 = sphi %s779, %s923
                  %s885 = sphi %s790, %s924
                $region85: #{flow_sigma_forward.1} parent=81 // loop_header_branch
                  %882 = sbr.rel (%p879) target = $region89
                $region86: #{flow_sigma_forward.1} parent=81 // loop_body
                  %v886 = vld [vmem:[%s884] sm:$0xff]
                  %887 = vst [vmem:[%s885] sm:$0xff] %v886
                  %v888 = vld [vmem:[%s884 + $0x8] sm:$0xff]
                  %889 = vst [vmem:[%s885 + $0x8] sm:$0xff] %v888
                  %v890 = vld [vmem:[%s884 + $0x10] sm:$0xff]
                  %891 = vst [vmem:[%s885 + $0x10] sm:$0xff] %v890
                  %v892 = vld [vmem:[%s884 + $0x18] sm:$0xff]
                  %893 = vst [vmem:[%s885 + $0x18] sm:$0xff] %v892
                  %v894 = vld [vmem:[%s884 + $0x20] sm:$0xff]
                  %895 = vst [vmem:[%s885 + $0x20] sm:$0xff] %v894
                  %v896 = vld [vmem:[%s884 + $0x28] sm:$0xff]
                  %897 = vst [vmem:[%s885 + $0x28] sm:$0xff] %v896
                  %v898 = vld [vmem:[%s884 + $0x30] sm:$0xff]
                  %899 = vst [vmem:[%s885 + $0x30] sm:$0xff] %v898
                  %v900 = vld [vmem:[%s884 + $0x38] sm:$0xff]
                  %901 = vst [vmem:[%s885 + $0x38] sm:$0xff] %v900
                  %v902 = vld [vmem:[%s884 + $0x40] sm:$0xff]
                  %903 = vst [vmem:[%s885 + $0x40] sm:$0xff] %v902
                  %v904 = vld [vmem:[%s884 + $0x48] sm:$0xff]
                  %905 = vst [vmem:[%s885 + $0x48] sm:$0xff] %v904
                  %v906 = vld [vmem:[%s884 + $0x50] sm:$0xff]
                  %907 = vst [vmem:[%s885 + $0x50] sm:$0xff] %v906
                  %v908 = vld [vmem:[%s884 + $0x58] sm:$0xff]
                  %909 = vst [vmem:[%s885 + $0x58] sm:$0xff] %v908
                  %v910 = vld [vmem:[%s884 + $0x60] sm:$0xff]
                  %911 = vst [vmem:[%s885 + $0x60] sm:$0xff] %v910
                  %v912 = vld [vmem:[%s884 + $0x68] sm:$0xff]
                  %913 = vst [vmem:[%s885 + $0x68] sm:$0xff] %v912
                  %v914 = vld [vmem:[%s884 + $0x70] sm:$0xff]
                  %915 = vst [vmem:[%s885 + $0x70] sm:$0xff] %v914
                  %v916 = vld [vmem:[%s884 + $0x78] sm:$0xff]
                  %917 = vst [vmem:[%s885 + $0x78] sm:$0xff] %v916
                  %s918 = sadd.s32 1, %s883
                  %p919 = scmp.ge.s32.totalorder %s918, %s876
                  %s920 = scalar_select %p919, 0, %s918
                  %s921 = smul.u32 %s920, 128
                  %s922 = smul.u32 %s920, 128
                  %s923 = scalar_lea.vmem %s779, %s921 [#allocation3]
                  %s924 = scalar_lea.vmem %s790, %s922
                $region87: #{flow_sigma_forward.1} parent=81 // loop_footer
                  %s880 = sadd.s32 %s878, 1
                $region88: #{flow_sigma_forward.1} parent=81 // loop_footer_branch
                  %877 = sbr.rel target = $region84
                $region89: #{flow_sigma_forward.1} parent=81 // loop_exit
                  _
                %s925 = sshrl.u32 %s786, 4
                %s926 = sand.u32 %s786, 15
                %s927 = smul.u32 %s925, 16
                %s928 = smul.u32 8, %s927
                %s929 = scalar_lea.vmem %s779, %s928 [#allocation3]
                %s930 = smul.u32 8, %s927
                %s931 = scalar_lea.vmem %s790, %s930
                // While loop
                $region90: #{flow_sigma_forward.1} parent=81 // loop_pre_header
                  _
                $region91: #{flow_sigma_forward.1} parent=81 // loop_header
                  %s933 = sphi 0, %s935
                  %p934 = scmp.ge.s32.totalorder %s933, %s926
                  %s938 = sphi 0, %s945
                  %s939 = sphi %s929, %s948
                  %s940 = sphi %s931, %s949
                $region92: #{flow_sigma_forward.1} parent=81 // loop_header_branch
                  %937 = sbr.rel (%p934) target = $region96
                $region93: #{flow_sigma_forward.1} parent=81 // loop_body
                  %v941 = vld [vmem:[%s939] sm:$0xff]
                  %942 = vst [vmem:[%s940] sm:$0xff] %v941
                  %s943 = sadd.s32 1, %s938
                  %p944 = scmp.ge.s32.totalorder %s943, %s926
                  %s945 = scalar_select %p944, 0, %s943
                  %s946 = smul.u32 %s945, 8
                  %s947 = smul.u32 %s945, 8
                  %s948 = scalar_lea.vmem %s929, %s946 [#allocation3]
                  %s949 = scalar_lea.vmem %s931, %s947
                $region94: #{flow_sigma_forward.1} parent=81 // loop_footer
                  %s935 = sadd.s32 %s933, 1
                $region95: #{flow_sigma_forward.1} parent=81 // loop_footer_branch
                  %932 = sbr.rel target = $region91
                $region96: #{flow_sigma_forward.1} parent=81 // loop_exit
                  _
              $region82: #{flow_sigma_forward.1} parent=59 // pred_fallthru
                _
              // Predicated region
              $region97: #{flow_sigma_forward.1} parent=59 // pred_check
                _
              $region98: #{flow_sigma_forward.1} parent=59 // pred_check_branch
                %951 = sbr.rel target = $region100
              $region99: #{flow_sigma_forward.1} parent=59 // pred_region
                _
              $region100: #{flow_sigma_forward.1} parent=59 // pred_fallthru
                _
            $region60: #{flow_sigma_forward.1} parent=55 // pred_fallthru
              _
            // Predicated region
            $region61: #{flow_sigma_forward.1} parent=55 // pred_check
              _
            $region62: #{flow_sigma_forward.1} parent=55 // pred_check_branch
              %797 = sbr.rel target = $region64
            $region63: #{flow_sigma_forward.1} parent=55 // pred_region
              %s799 = ssub.s32 256, 1
              %s800 = sshrl.u32 %s786, 4
              // While loop
              $region65: #{flow_sigma_forward.1} parent=63 // loop_pre_header
                _
              $region66: #{flow_sigma_forward.1} parent=63 // loop_header
                %s802 = sphi 0, %s804
                %p803 = scmp.ge.s32.totalorder %s802, %s800
                %s807 = sphi 0, %s844
                %s808 = sphi %s779, %s847
                %s809 = sphi %s790, %s848
              $region67: #{flow_sigma_forward.1} parent=63 // loop_header_branch
                %806 = sbr.rel (%p803) target = $region71
              $region68: #{flow_sigma_forward.1} parent=63 // loop_body
                %v810 = vld [vmem:[%s808] sm:%s799]
                %811 = vst [vmem:[%s809] sm:%s799] %v810
                %v812 = vld [vmem:[%s808 + $0x8] sm:%s799]
                %813 = vst [vmem:[%s809 + $0x8] sm:%s799] %v812
                %v814 = vld [vmem:[%s808 + $0x10] sm:%s799]
                %815 = vst [vmem:[%s809 + $0x10] sm:%s799] %v814
                %v816 = vld [vmem:[%s808 + $0x18] sm:%s799]
                %817 = vst [vmem:[%s809 + $0x18] sm:%s799] %v816
                %v818 = vld [vmem:[%s808 + $0x20] sm:%s799]
                %819 = vst [vmem:[%s809 + $0x20] sm:%s799] %v818
                %v820 = vld [vmem:[%s808 + $0x28] sm:%s799]
                %821 = vst [vmem:[%s809 + $0x28] sm:%s799] %v820
                %v822 = vld [vmem:[%s808 + $0x30] sm:%s799]
                %823 = vst [vmem:[%s809 + $0x30] sm:%s799] %v822
                %v824 = vld [vmem:[%s808 + $0x38] sm:%s799]
                %825 = vst [vmem:[%s809 + $0x38] sm:%s799] %v824
                %v826 = vld [vmem:[%s808 + $0x40] sm:%s799]
                %827 = vst [vmem:[%s809 + $0x40] sm:%s799] %v826
                %v828 = vld [vmem:[%s808 + $0x48] sm:%s799]
                %829 = vst [vmem:[%s809 + $0x48] sm:%s799] %v828
                %v830 = vld [vmem:[%s808 + $0x50] sm:%s799]
                %831 = vst [vmem:[%s809 + $0x50] sm:%s799] %v830
                %v832 = vld [vmem:[%s808 + $0x58] sm:%s799]
                %833 = vst [vmem:[%s809 + $0x58] sm:%s799] %v832
                %v834 = vld [vmem:[%s808 + $0x60] sm:%s799]
                %835 = vst [vmem:[%s809 + $0x60] sm:%s799] %v834
                %v836 = vld [vmem:[%s808 + $0x68] sm:%s799]
                %837 = vst [vmem:[%s809 + $0x68] sm:%s799] %v836
                %v838 = vld [vmem:[%s808 + $0x70] sm:%s799]
                %839 = vst [vmem:[%s809 + $0x70] sm:%s799] %v838
                %v840 = vld [vmem:[%s808 + $0x78] sm:%s799]
                %841 = vst [vmem:[%s809 + $0x78] sm:%s799] %v840
                %s842 = sadd.s32 1, %s807
                %p843 = scmp.ge.s32.totalorder %s842, %s800
                %s844 = scalar_select %p843, 0, %s842
                %s845 = smul.u32 %s844, 128
                %s846 = smul.u32 %s844, 128
                %s847 = scalar_lea.vmem %s779, %s845 [#allocation3]
                %s848 = scalar_lea.vmem %s790, %s846
              $region69: #{flow_sigma_forward.1} parent=63 // loop_footer
                %s804 = sadd.s32 %s802, 1
              $region70: #{flow_sigma_forward.1} parent=63 // loop_footer_branch
                %801 = sbr.rel target = $region66
              $region71: #{flow_sigma_forward.1} parent=63 // loop_exit
                _
              %s849 = sshrl.u32 %s786, 4
              %s850 = sand.u32 %s786, 15
              %s851 = smul.u32 %s849, 16
              %s852 = smul.u32 8, %s851
              %s853 = scalar_lea.vmem %s779, %s852 [#allocation3]
              %s854 = smul.u32 8, %s851
              %s855 = scalar_lea.vmem %s790, %s854
              // While loop
              $region72: #{flow_sigma_forward.1} parent=63 // loop_pre_header
                _
              $region73: #{flow_sigma_forward.1} parent=63 // loop_header
                %s857 = sphi 0, %s859
                %p858 = scmp.ge.s32.totalorder %s857, %s850
                %s862 = sphi 0, %s869
                %s863 = sphi %s853, %s872
                %s864 = sphi %s855, %s873
              $region74: #{flow_sigma_forward.1} parent=63 // loop_header_branch
                %861 = sbr.rel (%p858) target = $region78
              $region75: #{flow_sigma_forward.1} parent=63 // loop_body
                %v865 = vld [vmem:[%s863] sm:%s799]
                %866 = vst [vmem:[%s864] sm:%s799] %v865
                %s867 = sadd.s32 1, %s862
                %p868 = scmp.ge.s32.totalorder %s867, %s850
                %s869 = scalar_select %p868, 0, %s867
                %s870 = smul.u32 %s869, 8
                %s871 = smul.u32 %s869, 8
                %s872 = scalar_lea.vmem %s853, %s870 [#allocation3]
                %s873 = scalar_lea.vmem %s855, %s871
              $region76: #{flow_sigma_forward.1} parent=63 // loop_footer
                %s859 = sadd.s32 %s857, 1
              $region77: #{flow_sigma_forward.1} parent=63 // loop_footer_branch
                %856 = sbr.rel target = $region73
              $region78: #{flow_sigma_forward.1} parent=63 // loop_exit
                _
            $region64: #{flow_sigma_forward.1} parent=55 // pred_fallthru
              _
          $region56: #{flow_sigma_forward.1} parent=51 // pred_fallthru
            _
          %952 = vnop
        $region52: #{flow_sigma_forward.1} parent=47 // pred_fallthru
          _
      $region48: #{flow_sigma_forward.1} parent=5 // pred_fallthru
        _
      %p953 = scmp.le.s32.totalorder 2, %s15
      // Predicated region
      $region101: #{flow_sigma_forward.1} parent=5 // pred_check
        %p954 = pneg %p953
      $region102: #{flow_sigma_forward.1} parent=5 // pred_check_branch
        %956 = sbr.rel (%p954) target = $region104
      $region103: #{flow_sigma_forward.1} parent=5 // pred_region
        %s957 = ssub.s32 %s15, 2
        // Predicated region
        $region105: #{flow_sigma_forward.1} parent=103 // pred_check
          %p958 = pneg %p196
        $region106: #{flow_sigma_forward.1} parent=103 // pred_check_branch
          %960 = sbr.rel (%p958) target = $region108
        $region107: #{flow_sigma_forward.1} parent=103 // pred_region
          %s961 = sand.u32 %s181, 1
          %s962 = sand.u32 %s181, 1
          %s963 = smul.addr %s962, 128
          %s964 = scalar_lea.vmem [#allocation3], %s963
        $region108: #{flow_sigma_forward.1} parent=103 // pred_fallthru
          _
      $region104: #{flow_sigma_forward.1} parent=5 // pred_fallthru
        _
    $region6: #{flow_sigma_forward.1} parent=1 // loop_footer
      %s19 = sadd.s32 1, %s15
    $region7: #{flow_sigma_forward.1} parent=1 // loop_footer_branch
      %14 = sbr.rel target = $region3
    $region8: #{flow_sigma_forward.1} parent=1 // loop_exit
      _

</llo_original>
